<compile_context>
chip_gen: v7x
topology: tpu7x:2x2x1
jax: 0.10.0
libtpu: 0.0.40
codegen_flags: <defaults>
</compile_context>

<pallas_src>
import functools

import jax
import jax.numpy as jnp
from jax.experimental import pallas as pl
from jax.experimental.pallas import tpu as pltpu

PAD_ID = 0


def _round_up(x, m):
    return ((x + m - 1) // m) * m


def _effective_tn(vocab_size, tn):
    """Clamp the requested vocab tile to the (128-aligned) vocab size."""
    return max(128, _round_up(min(tn, _round_up(vocab_size, 128)), 128))


def _default_config():
    """Per-generation tile / VMEM defaults (review: tm is the arithmetic
    intensity on the streamed W operand, so v6e needs a much larger tm than
    v5e; v7x has only 64 MiB VMEM/TC and 2 TCs -> moderate tm, >=2 row tiles)."""
    kind = ""
    try:
        kind = jax.devices()[0].device_kind.lower()
    except Exception:
        pass
    if "v6" in kind:
        return dict(tm=1024, tn=512, vmem_limit=96 * 2**20, min_row_tiles=1)
    if "v7" in kind or "tpu7" in kind:
        return dict(tm=512, tn=512, vmem_limit=48 * 2**20, min_row_tiles=2)
    # v5e / unknown: conservative
    return dict(tm=256, tn=512, vmem_limit=64 * 2**20, min_row_tiles=1)


def _tile_vmem_bytes(tm, tn, H):
    # hidden tile (single-buffered bf16) + W tile (double-buffered bf16)
    # + ~2 live [tm, tn] f32 temporaries + tiny scratch.
    return tm * H * 2 + 2 * H * tn * 2 + 2 * tm * tn * 4 + 4 * tm * 4


def _probe_single_buffer_support() -> bool:
    """Check whether BlockSpec(pipeline_mode=pl.Buffered(1)) lowers/runs here.
    Single-buffering the grid-resident hidden tile reclaims tm*H*2 bytes of
    VMEM; silently fall back to default double buffering when unsupported."""
    try:
        def _k(x_ref, o_ref):
            o_ref[...] = x_ref[...] + 1.0

        fn = pl.pallas_call(
            _k,
            out_shape=jax.ShapeDtypeStruct((8, 128), jnp.float32),
            grid=(2,),
            in_specs=[pl.BlockSpec((8, 128), lambda i: (0, 0),
                                   pipeline_mode=pl.Buffered(1))],
            out_specs=pl.BlockSpec((8, 128), lambda i: (0, 0)),
        )
        jax.block_until_ready(fn(jnp.zeros((8, 128), jnp.float32)))
        return True
    except Exception:  # version / backend dependent
        return False


_HIDDEN_SINGLE_BUFFER = _probe_single_buffer_support()


# ----------------------------------------------------------------------------
# Pallas kernel: vocab-tiled output projection + online-softmax cross-entropy
# ----------------------------------------------------------------------------
def _ce_proj_kernel(h_ref, w_ref, y_ref, loss_ref, cnt_ref,
                    m_sc, s_sc, p_sc, *, vocab_size, tn, pad_id, mask_vocab):
    j = pl.program_id(1)  # vocab-tile index (reduction axis, innermost)

    @pl.when(j == 0)
    def _():
        m_sc[...] = jnp.full(m_sc.shape, -jnp.inf, m_sc.dtype)
        s_sc[...] = jnp.zeros(s_sc.shape, s_sc.dtype)
        p_sc[...] = jnp.zeros(p_sc.shape, p_sc.dtype)

    # [tm, H] @ [H, tn] on the MXU (bf16 inputs, f32 accumulation).
    logits = jnp.dot(h_ref[...], w_ref[...], preferred_element_type=jnp.float32)

    # Global vocab column ids: one (1, tn) lane iota + a scalar add; broadcast
    # against the (tm, 1) labels / (tm, tn) logits where needed.
    col_ids = j * tn + jax.lax.broadcasted_iota(jnp.int32, (1, tn), 1)

    if mask_vocab:
        # Trace-time branch: only emitted when V was padded up to a multiple
        # of tn. Padded columns (zero weight -> logit 0) must not contaminate
        # the softmax, so select them to -inf.
        logits = jnp.where(col_ids < vocab_size, logits, -jnp.inf)

    labels = y_ref[...]  # [tm, 1] int32
    # TODO(synk): guard/clamp labels >= vocab_size (corrupt data) with a
    # pl.debug_check; clean data never hits the masked region.

    # Picked (label) logit -- consume `logits` before the exp so at most ~one
    # [tm, tn] f32 temporary is live at a time (VMEM scratch pressure).
    p_sc[...] = p_sc[...] + jnp.sum(
        jnp.where(col_ids == labels, logits, 0.0), axis=-1, keepdims=True)

    # Online (streaming) softmax statistics, held per-row in VMEM scratch.
    m_prev = m_sc[...]
    m_new = jnp.maximum(m_prev, jnp.max(logits, axis=-1, keepdims=True))
    s_sc[...] = s_sc[...] * jnp.exp(m_prev - m_new) + jnp.sum(
        jnp.exp(logits - m_new), axis=-1, keepdims=True)
    m_sc[...] = m_new

    # Epilogue: scalarize ONCE per row tile and splat into the lane-dense
    # (1, 8, 128) partial-output tile (unmasked vst).
    @pl.when(j == pl.num_programs(1) - 1)
    def _():
        lse = m_sc[...] + jnp.log(s_sc[...])             # [tm, 1]
        valid = (labels != pad_id).astype(jnp.float32)   # [tm, 1]
        per_tok = (lse - p_sc[...]) * valid              # [tm, 1]
        loss_ref[...] = jnp.zeros(loss_ref.shape, jnp.float32) + jnp.sum(per_tok)
        cnt_ref[...] = jnp.zeros(cnt_ref.shape, jnp.float32) + jnp.sum(valid)


def prepare_output_weight(w_out, tn=None):
    """One-time (init-time) bf16 cast + vocab padding of the output projection.

    Doing this outside the jitted step avoids re-reading/rewriting the full
    [H, V] weight in HBM on every forward (a pure bandwidth win on all chips).
    Returns (prepared_weight [H, v_pad] bf16, vocab_size).
    """
    _, V = w_out.shape
    if tn is None:
        tn = _default_config()["tn"]
    tn = _effective_tn(V, tn)
    v_pad = _round_up(V, tn)
    w = jnp.asarray(w_out, jnp.bfloat16)
    if v_pad != V:
        w = jnp.pad(w, ((0, 0), (0, v_pad - V)))
    return w, V


def ce_projection_loss(hidden_flat, w_prepared, labels_flat, *, vocab_size,
                       pad_id=PAD_ID, tm=None, tn=None):
    """hidden_flat: [BT, H] (any float dtype, bf16 preferred),
    w_prepared: [H, v_pad] bf16 (from prepare_output_weight),
    labels_flat: [BT, 1] int.

    Returns (summed masked cross-entropy, number of non-pad samples).
    """
    BT, H = hidden_flat.shape
    H2, v_pad_w = w_prepared.shape
    assert H == H2

    cfg = _default_config()
    tm = cfg["tm"] if tm is None else tm
    tn = cfg["tn"] if tn is None else tn
    vmem_limit = cfg["vmem_limit"]
    min_row_tiles = cfg["min_row_tiles"]

    tn = _effective_tn(vocab_size, tn)

    # Align the prepared weight to the vocab tile (normally a no-op; only hit
    # if prepare_output_weight was called with a different tn).
    w = w_prepared
    v_pad = v_pad_w
    if v_pad % tn != 0 or v_pad < vocab_size:
        v_pad = _round_up(max(v_pad, vocab_size), tn)
        w = jnp.pad(w, ((0, 0), (0, v_pad - v_pad_w)))
    mask_vocab = (v_pad != vocab_size)

    # Row tiling: clamp to the (8-aligned) row count, keep >= min_row_tiles
    # row tiles so v7x megacore can shard the parallel row axis, then shrink
    # until the VMEM footprint fits the per-generation budget.
    bt8 = _round_up(BT, 8)
    tm = max(8, min(_round_up(tm, 8), bt8))
    if bt8 // tm < min_row_tiles and bt8 >= 8 * min_row_tiles:
        tm = max(8, _round_up(-(-bt8 // min_row_tiles), 8))
    budget = int(vmem_limit * 0.75)
    while _tile_vmem_bytes(tm, tn, H) > budget and tm > 8:
        tm = max(8, _round_up(tm // 2, 8))

    bt_pad = _round_up(BT, tm)
    g_rows = bt_pad // tm
    g_vocab = v_pad // tn

    h = hidden_flat.astype(jnp.bfloat16)   # no-op if the model already emits bf16
    y = labels_flat.astype(jnp.int32)
    if bt_pad != BT:
        h = jnp.pad(h, ((0, bt_pad - BT), (0, 0)))
        y = jnp.pad(y, ((0, bt_pad - BT), (0, 0)), constant_values=pad_id)

    kernel = functools.partial(_ce_proj_kernel, vocab_size=vocab_size, tn=tn,
                               pad_id=pad_id, mask_vocab=mask_vocab)

    # Hidden rows are resident across the whole vocab axis -> the second
    # pipeline buffer buys nothing; single-buffer it to reclaim VMEM for tm.
    h_spec_kwargs = {}
    if _HIDDEN_SINGLE_BUFFER:
        h_spec_kwargs["pipeline_mode"] = pl.Buffered(1)
    h_spec = pl.BlockSpec((tm, H), lambda i, j: (i, 0), **h_spec_kwargs)

    cost = pl.CostEstimate(
        flops=2 * bt_pad * H * v_pad,
        transcendentals=bt_pad * v_pad,
        bytes_accessed=(g_rows * H * v_pad * 2   # W streamed once per row tile
                        + bt_pad * H * 2         # hidden rows
                        + bt_pad * 4             # labels
                        + g_rows * 2 * 8 * 128 * 4),
    )

    # TODO(synk): labels could live in SMEM via scalar prefetch to avoid the
    # padded (tm, 1) VMEM block; negligible at these sizes.
    loss_p, cnt_p = pl.pallas_call(
        kernel,
        out_shape=(
            jax.ShapeDtypeStruct((g_rows, 8, 128), jnp.float32),
            jax.ShapeDtypeStruct((g_rows, 8, 128), jnp.float32),
        ),
        grid_spec=pltpu.PrefetchScalarGridSpec(
            num_scalar_prefetch=0,
            grid=(g_rows, g_vocab),
            in_specs=[
                h_spec,                                         # hidden rows (resident)
                pl.BlockSpec((H, tn), lambda i, j: (0, j)),     # streamed W vocab tile
                pl.BlockSpec((tm, 1), lambda i, j: (i, 0)),     # labels
            ],
            out_specs=[
                pl.BlockSpec((1, 8, 128), lambda i, j: (i, 0, 0)),
                pl.BlockSpec((1, 8, 128), lambda i, j: (i, 0, 0)),
            ],
            scratch_shapes=[
                pltpu.VMEM((tm, 1), jnp.float32),  # running max
                pltpu.VMEM((tm, 1), jnp.float32),  # running exp-sum
                pltpu.VMEM((tm, 1), jnp.float32),  # picked (label) logit
            ],
        ),
        compiler_params=pltpu.CompilerParams(
            # Row axis parallel (each row tile owns its output block -> safe
            # for v7x megacore sharding); vocab reduction axis is arbitrary.
            dimension_semantics=("parallel", "arbitrary"),
            vmem_limit_bytes=int(vmem_limit),
        ),
        cost_estimate=cost,
    )(h, w, y)

    loss = jnp.sum(loss_p[:, 0, 0])
    n = jnp.sum(cnt_p[:, 0, 0])
    return loss, n


# ----------------------------------------------------------------------------
# Synthetic "SockeyeModel" glue (plain JAX) + ModelWithLoss.forward
# ----------------------------------------------------------------------------
def init_params(key, src_vocab, tgt_vocab, hidden, tn=None):
    k1, k2, k3 = jax.random.split(key, 3)
    w_out = 0.05 * jax.random.normal(k3, (hidden, tgt_vocab), jnp.float32)
    w_prep, vocab_size = prepare_output_weight(w_out, tn=tn)  # once, at init
    params = {
        "src_emb": 0.02 * jax.random.normal(k1, (src_vocab, hidden), jnp.float32),
        "tgt_emb": 0.02 * jax.random.normal(k2, (tgt_vocab, hidden), jnp.float32),
        "w_out_prepared": w_prep,
    }
    return params, vocab_size


def model_hidden(params, source, source_length, target, target_length):
    """Tiny encoder-decoder surrogate producing decoder hidden states [B, T, H]
    in bf16 (the cast is folded into the model so the step never re-casts)."""
    B, S = source.shape
    src_e = jnp.take(params["src_emb"], source, axis=0)               # [B, S, H]
    src_mask = (jnp.arange(S)[None, :] < source_length[:, None]).astype(jnp.float32)
    ctx = jnp.sum(src_e * src_mask[..., None], axis=1) / jnp.maximum(
        source_length.astype(jnp.float32)[:, None], 1.0)              # [B, H]
    tgt_e = jnp.take(params["tgt_emb"], target, axis=0)               # [B, T, H]
    hidden = jnp.tanh(tgt_e + ctx[:, None, :]).astype(jnp.bfloat16)   # [B, T, H] bf16
    return hidden


@functools.partial(jax.jit, static_argnames=("vocab_size", "tm", "tn"))
def model_with_loss_forward(params, source, source_length, target, target_length,
                            labels, *, vocab_size, tm=None, tn=None):
    """Mirrors ModelWithLoss.forward: run model, apply losses, sum them."""
    B, T = labels.shape
    hidden = model_hidden(params, source, source_length, target, target_length)
    h_flat = hidden.reshape(B * T, -1)
    labels_flat = labels.reshape(B * T, 1).astype(jnp.int32)

    # Single loss function (fused projection + CE in Pallas).
    loss_val, num_samples = ce_projection_loss(
        h_flat, params["w_out_prepared"], labels_flat,
        vocab_size=vocab_size, tm=tm, tn=tn)

    loss_values = [loss_val]
    num_samples_list = [num_samples]
    # len(loss_values) == 1 -> sum_losses = loss_values[0] (matches PyTorch branch).
    sum_losses = loss_values[0]
    return sum_losses, loss_values, num_samples_list


if __name__ == "__main__":
    key = jax.random.PRNGKey(0)
    B, S, T, H = 2, 8, 8, 32
    SRC_VOCAB, TGT_VOCAB = 64, 300   # 300 -> padded to 384 lanes: exercises the mask path

    kp, ks, kt, kl = jax.random.split(key, 4)
    params, vocab_size = init_params(kp, SRC_VOCAB, TGT_VOCAB, H, tn=128)

    source = jax.random.randint(ks, (B, S), 1, SRC_VOCAB, dtype=jnp.int32)
    target = jax.random.randint(kt, (B, T), 1, TGT_VOCAB, dtype=jnp.int32)
    labels = jax.random.randint(kl, (B, T), 1, TGT_VOCAB, dtype=jnp.int32)

    source_length = jnp.array([8, 5], dtype=jnp.int32)
    target_length = jnp.array([8, 6], dtype=jnp.int32)

    # Pad positions past target_length get PAD_ID (excluded from loss / num_samples).
    tgt_pos = jnp.arange(T)[None, :]
    labels = jnp.where(tgt_pos < target_length[:, None], labels, PAD_ID)
    target = jnp.where(tgt_pos < target_length[:, None], target, PAD_ID)

    # Small tiles so the tiny demo exercises multi-row partials and the
    # multi-tile online softmax with vocab-pad masking (grid = (2, 3));
    # production tiles come from the per-generation defaults.
    sum_losses, loss_values, num_samples = model_with_loss_forward(
        params, source, source_length, target, target_length, labels,
        vocab_size=vocab_size, tm=8, tn=128)
    jax.block_until_ready(sum_losses)

    # Pure-JAX reference (same bf16 rounding of the matmul operands).
    hidden = model_hidden(params, source, source_length, target, target_length)
    h_f32 = hidden.reshape(B * T, H).astype(jnp.float32)
    w_f32 = params["w_out_prepared"][:, :TGT_VOCAB].astype(jnp.float32)
    logits = h_f32 @ w_f32
    logp = jax.nn.log_softmax(logits, axis=-1)
    lbl = labels.reshape(-1)
    ref_per_tok = -jnp.take_along_axis(logp, lbl[:, None], axis=1)[:, 0]
    valid = (lbl != PAD_ID).astype(jnp.float32)
    ref_loss = jnp.sum(ref_per_tok * valid)
    ref_n = jnp.sum(valid)
    assert jnp.allclose(sum_losses, ref_loss, rtol=1e-2, atol=1e-2), (sum_losses, ref_loss)
    assert jnp.allclose(num_samples[0], ref_n), (num_samples[0], ref_n)

    # Second check: mask-free path (V an exact multiple of tn -> no vocab mask
    # code is emitted at trace time).
    H2, V2, BT2 = 32, 256, 16
    wk = 0.05 * jax.random.normal(jax.random.PRNGKey(1), (H2, V2), jnp.float32)
    hk = jax.random.normal(jax.random.PRNGKey(2), (BT2, H2), jnp.float32).astype(jnp.bfloat16)
    lk = jax.random.randint(jax.random.PRNGKey(3), (BT2, 1), 0, V2, dtype=jnp.int32)
    w_prep2, _ = prepare_output_weight(wk, tn=128)
    loss2, n2 = ce_projection_loss(hk, w_prep2, lk, vocab_size=V2, tm=8, tn=128)
    jax.block_until_ready(loss2)

    logits2 = hk.astype(jnp.float32) @ w_prep2[:, :V2].astype(jnp.float32)
    logp2 = jax.nn.log_softmax(logits2, axis=-1)
    per2 = -jnp.take_along_axis(logp2, lk, axis=1)[:, 0]
    valid2 = (lk[:, 0] != PAD_ID).astype(jnp.float32)
    ref_loss2 = jnp.sum(per2 * valid2)
    ref_n2 = jnp.sum(valid2)
    assert jnp.allclose(loss2, ref_loss2, rtol=1e-2, atol=1e-2), (loss2, ref_loss2)
    assert jnp.allclose(n2, ref_n2), (n2, ref_n2)

    print("KERNEL_OK")
</pallas_src>

<mosaic_0001>
module attributes {stable_mosaic.version = 11 : i64} {
  func.func @_k(%arg0: i32, %arg1: memref<8x128xf32, #tpu.memory_space<vmem>>, %arg2: memref<8x128xf32, #tpu.memory_space<vmem>>) attributes {dimension_semantics = [#tpu.dimension_semantics<arbitrary>], iteration_bounds = array<i64: 2>, scalar_prefetch = 0 : i64, scratch_operands = 0 : i64, tpu.core_type = #tpu.core_type<tc>, window_params = [{pipeline_mode = #tpu.pipeline_mode<synchronous>, transform_indices = @transform_0, window_bounds = array<i64: 8, 128>}, {pipeline_mode = #tpu.pipeline_mode<synchronous>, transform_indices = @transform_1, window_bounds = array<i64: 8, 128>}]} {
    %c0 = arith.constant 0 : index
    %c0_0 = arith.constant 0 : index
    %0 = vector.load %arg1[%c0, %c0_0] : memref<8x128xf32, #tpu.memory_space<vmem>>, vector<8x128xf32>
    %cst = arith.constant 1.000000e+00 : f32
    %1 = vector.broadcast %cst : f32 to vector<8x128xf32>
    %2 = arith.addf %0, %1 : vector<8x128xf32>
    %c0_1 = arith.constant 0 : index
    %c0_2 = arith.constant 0 : index
    %3 = vector.load %arg2[%c0_1, %c0_2] : memref<8x128xf32, #tpu.memory_space<vmem>>, vector<8x128xf32>
    tpu.vector_store %arg2[%c0_1, %c0_2], %2 {strides = array<i32>} : memref<8x128xf32, #tpu.memory_space<vmem>>, vector<8x128xf32>,
    return
  }
  func.func @transform_0(%arg0: i32) -> (i32, i32) {
    %c0_i32 = arith.constant 0 : i32
    %c0_i32_0 = arith.constant 0 : i32
    %c0_i32_1 = arith.constant 0 : i32
    return %c0_i32, %c0_i32_0 : i32, i32
  }
  func.func @transform_1(%arg0: i32) -> (i32, i32) {
    %c0_i32 = arith.constant 0 : i32
    %c0_i32_0 = arith.constant 0 : i32
    %c0_i32_1 = arith.constant 0 : i32
    return %c0_i32, %c0_i32_0 : i32, i32
  }
}

module attributes {stable_mosaic.version = 11 : i64} {
  func.func @_ce_proj_kernel(%arg0: i32, %arg1: i32, %arg2: memref<8x32xbf16, #tpu.memory_space<vmem>>, %arg3: memref<32x128xbf16, #tpu.memory_space<vmem>>, %arg4: memref<8x1xi32, #tpu.memory_space<vmem>>, %arg5: memref<1x8x128xf32, #tpu.memory_space<vmem>>, %arg6: memref<1x8x128xf32, #tpu.memory_space<vmem>>, %arg7: memref<8x1xf32, #tpu.memory_space<vmem>>, %arg8: memref<8x1xf32, #tpu.memory_space<vmem>>, %arg9: memref<8x1xf32, #tpu.memory_space<vmem>>) attributes {dimension_semantics = [#tpu.dimension_semantics<parallel>, #tpu.dimension_semantics<arbitrary>], iteration_bounds = array<i64: 2, 3>, scalar_prefetch = 0 : i64, scratch_operands = 3 : i64, tpu.core_type = #tpu.core_type<tc>, window_params = [{transform_indices = @transform_0, window_bounds = array<i64: 8, 32>}, {transform_indices = @transform_1, window_bounds = array<i64: 32, 128>}, {transform_indices = @transform_2, window_bounds = array<i64: 8, 1>}, {transform_indices = @transform_3, window_bounds = array<i64: 1, 8, 128>}, {transform_indices = @transform_4, window_bounds = array<i64: 1, 8, 128>}]} {
    %c0_i32 = arith.constant 0 : i32
    %0 = arith.cmpi eq, %arg1, %c0_i32 : i32
    %1 = arith.extui %0 : i1 to i32
    %c0_i32_0 = arith.constant 0 : i32
    %2 = arith.cmpi ne, %1, %c0_i32_0 : i32
    scf.if %2 {
      %cst_24 = arith.constant 0xFF800000 : f32
      %46 = vector.broadcast %cst_24 : f32 to vector<8x1xf32>
      %c0_25 = arith.constant 0 : index
      %c0_26 = arith.constant 0 : index
      %47 = vector.load %arg7[%c0_25, %c0_26] : memref<8x1xf32, #tpu.memory_space<vmem>>, vector<8x1xf32>
      tpu.vector_store %arg7[%c0_25, %c0_26], %46 {strides = array<i32>} : memref<8x1xf32, #tpu.memory_space<vmem>>, vector<8x1xf32>,
      %cst_27 = arith.constant 0.000000e+00 : f32
      %48 = vector.broadcast %cst_27 : f32 to vector<8x1xf32>
      %c0_28 = arith.constant 0 : index
      %c0_29 = arith.constant 0 : index
      %49 = vector.load %arg8[%c0_28, %c0_29] : memref<8x1xf32, #tpu.memory_space<vmem>>, vector<8x1xf32>
      tpu.vector_store %arg8[%c0_28, %c0_29], %48 {strides = array<i32>} : memref<8x1xf32, #tpu.memory_space<vmem>>, vector<8x1xf32>,
      %cst_30 = arith.constant 0.000000e+00 : f32
      %50 = vector.broadcast %cst_30 : f32 to vector<8x1xf32>
      %c0_31 = arith.constant 0 : index
      %c0_32 = arith.constant 0 : index
      %51 = vector.load %arg9[%c0_31, %c0_32] : memref<8x1xf32, #tpu.memory_space<vmem>>, vector<8x1xf32>
      tpu.vector_store %arg9[%c0_31, %c0_32], %50 {strides = array<i32>} : memref<8x1xf32, #tpu.memory_space<vmem>>, vector<8x1xf32>,
    } else {
    }
    %c0 = arith.constant 0 : index
    %c0_1 = arith.constant 0 : index
    %3 = vector.load %arg2[%c0, %c0_1] : memref<8x32xbf16, #tpu.memory_space<vmem>>, vector<8x32xbf16>
    %c0_2 = arith.constant 0 : index
    %c0_3 = arith.constant 0 : index
    %4 = vector.load %arg3[%c0_2, %c0_3] : memref<32x128xbf16, #tpu.memory_space<vmem>>, vector<32x128xbf16>
    %cst = arith.constant dense<0.000000e+00> : vector<8x128xf32>
    %5 = tpu.matmul %3, %4, %cst {dimension_numbers = #tpu.dot_dimension_numbers<[1], [0], [0], [1], [0, 0, 1, 1], [], []>} : vector<8x32xbf16>, vector<32x128xbf16>, vector<8x128xf32> -> vector<8x128xf32>
    %c128_i32 = arith.constant 128 : i32
    %6 = arith.muli %arg1, %c128_i32 : i32
    %7 = tpu.iota {dimensions = array<i32: 1>} : vector<1x128xi32>
    %8 = vector.broadcast %6 : i32 to vector<1x128xi32>
    %9 = arith.addi %8, %7 : vector<1x128xi32>
    %c300_i32 = arith.constant 300 : i32
    %10 = vector.broadcast %c300_i32 : i32 to vector<1x128xi32>
    %11 = arith.cmpi slt, %9, %10 : vector<1x128xi32>
    %cst_4 = arith.constant 0xFF800000 : f32
    %12 = vector.shape_cast %11 : vector<1x128xi1> to vector<1x128xi1>
    %13 = vector.broadcast %12 : vector<1x128xi1> to vector<8x128xi1>
    %14 = vector.broadcast %cst_4 : f32 to vector<8x128xf32>
    %15 = arith.select %13, %5, %14 : vector<8x128xi1>, vector<8x128xf32>
    %c0_5 = arith.constant 0 : index
    %c0_6 = arith.constant 0 : index
    %16 = vector.load %arg4[%c0_5, %c0_6] : memref<8x1xi32, #tpu.memory_space<vmem>>, vector<8x1xi32>
    %c0_7 = arith.constant 0 : index
    %c0_8 = arith.constant 0 : index
    %17 = vector.load %arg9[%c0_7, %c0_8] : memref<8x1xf32, #tpu.memory_space<vmem>>, vector<8x1xf32>
    %18 = vector.broadcast %9 : vector<1x128xi32> to vector<8x128xi32>
    %19 = vector.broadcast %16 : vector<8x1xi32> to vector<8x128xi32>
    %20 = arith.cmpi eq, %18, %19 : vector<8x128xi32>
    %cst_9 = arith.constant 0.000000e+00 : f32
    %21 = vector.broadcast %cst_9 : f32 to vector<8x128xf32>
    %22 = arith.select %20, %15, %21 : vector<8x128xi1>, vector<8x128xf32>
    %cst_10 = arith.constant dense<0.000000e+00> : vector<8xf32>
    %23 = vector.multi_reduction <add>, %22, %cst_10 [1] : vector<8x128xf32> to vector<8xf32>
    %24 = vector.shape_cast %23 : vector<8xf32> to vector<8x1xf32>
    %25 = arith.addf %17, %24 : vector<8x1xf32>
    %c0_11 = arith.constant 0 : index
    %c0_12 = arith.constant 0 : index
    %26 = vector.load %arg9[%c0_11, %c0_12] : memref<8x1xf32, #tpu.memory_space<vmem>>, vector<8x1xf32>
    tpu.vector_store %arg9[%c0_11, %c0_12], %25 {strides = array<i32>} : memref<8x1xf32, #tpu.memory_space<vmem>>, vector<8x1xf32>,
    %c0_13 = arith.constant 0 : index
    %c0_14 = arith.constant 0 : index
    %27 = vector.load %arg7[%c0_13, %c0_14] : memref<8x1xf32, #tpu.memory_space<vmem>>, vector<8x1xf32>
    %cst_15 = arith.constant dense<0xFF800000> : vector<8xf32>
    %28 = vector.multi_reduction <maximumf>, %15, %cst_15 [1] : vector<8x128xf32> to vector<8xf32>
    %29 = vector.shape_cast %28 : vector<8xf32> to vector<8x1xf32>
    %30 = arith.maximumf %27, %29 : vector<8x1xf32>
    %c0_16 = arith.constant 0 : index
    %c0_17 = arith.constant 0 : index
    %31 = vector.load %arg8[%c0_16, %c0_17] : memref<8x1xf32, #tpu.memory_space<vmem>>, vector<8x1xf32>
    %32 = arith.subf %27, %30 : vector<8x1xf32>
    %33 = math.exp %32 : vector<8x1xf32>
    %34 = arith.mulf %31, %33 : vector<8x1xf32>
    %35 = vector.broadcast %30 : vector<8x1xf32> to vector<8x128xf32>
    %36 = arith.subf %15, %35 : vector<8x128xf32>
    %37 = math.exp %36 : vector<8x128xf32>
    %cst_18 = arith.constant dense<0.000000e+00> : vector<8xf32>
    %38 = vector.multi_reduction <add>, %37, %cst_18 [1] : vector<8x128xf32> to vector<8xf32>
    %39 = vector.shape_cast %38 : vector<8xf32> to vector<8x1xf32>
    %40 = arith.addf %34, %39 : vector<8x1xf32>
    %c0_19 = arith.constant 0 : index
    %c0_20 = arith.constant 0 : index
    %41 = vector.load %arg8[%c0_19, %c0_20] : memref<8x1xf32, #tpu.memory_space<vmem>>, vector<8x1xf32>
    tpu.vector_store %arg8[%c0_19, %c0_20], %40 {strides = array<i32>} : memref<8x1xf32, #tpu.memory_space<vmem>>, vector<8x1xf32>,
    %c0_21 = arith.constant 0 : index
    %c0_22 = arith.constant 0 : index
    %42 = vector.load %arg7[%c0_21, %c0_22] : memref<8x1xf32, #tpu.memory_space<vmem>>, vector<8x1xf32>
    tpu.vector_store %arg7[%c0_21, %c0_22], %30 {strides = array<i32>} : memref<8x1xf32, #tpu.memory_space<vmem>>, vector<8x1xf32>,
    %c2_i32 = arith.constant 2 : i32
    %43 = arith.cmpi eq, %arg1, %c2_i32 : i32
    %44 = arith.extui %43 : i1 to i32
    %c0_i32_23 = arith.constant 0 : i32
    %45 = arith.cmpi ne, %44, %c0_i32_23 : i32
    scf.if %45 {
      %c0_24 = arith.constant 0 : index
      %c0_25 = arith.constant 0 : index
      %46 = vector.load %arg7[%c0_24, %c0_25] : memref<8x1xf32, #tpu.memory_space<vmem>>, vector<8x1xf32>
      %c0_26 = arith.constant 0 : index
      %c0_27 = arith.constant 0 : index
      %47 = vector.load %arg8[%c0_26, %c0_27] : memref<8x1xf32, #tpu.memory_space<vmem>>, vector<8x1xf32>
      %48 = math.log %47 : vector<8x1xf32>
      %49 = arith.addf %46, %48 : vector<8x1xf32>
      %c0_i32_28 = arith.constant 0 : i32
      %50 = vector.broadcast %c0_i32_28 : i32 to vector<8x1xi32>
      %51 = arith.cmpi ne, %16, %50 : vector<8x1xi32>
      %52 = arith.extui %51 : vector<8x1xi1> to vector<8x1xi32>
      %53 = arith.sitofp %52 : vector<8x1xi32> to vector<8x1xf32>
      %c0_29 = arith.constant 0 : index
      %c0_30 = arith.constant 0 : index
      %54 = vector.load %arg9[%c0_29, %c0_30] : memref<8x1xf32, #tpu.memory_space<vmem>>, vector<8x1xf32>
      %55 = arith.subf %49, %54 : vector<8x1xf32>
      %56 = arith.mulf %55, %53 : vector<8x1xf32>
      %cst_31 = arith.constant 0.000000e+00 : f32
      %57 = vector.broadcast %cst_31 : f32 to vector<1x8x128xf32>
      %58 = vector.shape_cast %56 : vector<8x1xf32> to vector<1x8x1xf32>
      %cst_32 = arith.constant dense<0.000000e+00> : vector<1xf32>
      %59 = vector.multi_reduction <add>, %58, %cst_32 [1, 2] : vector<1x8x1xf32> to vector<1xf32>
      %60 = vector.shape_cast %59 : vector<1xf32> to vector<1x1x1xf32>
      %61 = vector.extract %60[0, 0, 0] : f32 from vector<1x1x1xf32>
      %62 = vector.broadcast %61 : f32 to vector<1x8x128xf32>
      %63 = arith.addf %57, %62 : vector<1x8x128xf32>
      %c0_33 = arith.constant 0 : index
      %c0_34 = arith.constant 0 : index
      %c0_35 = arith.constant 0 : index
      %64 = vector.load %arg5[%c0_33, %c0_34, %c0_35] : memref<1x8x128xf32, #tpu.memory_space<vmem>>, vector<1x8x128xf32>
      tpu.vector_store %arg5[%c0_33, %c0_34, %c0_35], %63 {strides = array<i32>} : memref<1x8x128xf32, #tpu.memory_space<vmem>>, vector<1x8x128xf32>,
      %cst_36 = arith.constant 0.000000e+00 : f32
      %65 = vector.broadcast %cst_36 : f32 to vector<1x8x128xf32>
      %66 = vector.shape_cast %53 : vector<8x1xf32> to vector<1x8x1xf32>
      %cst_37 = arith.constant dense<0.000000e+00> : vector<1xf32>
      %67 = vector.multi_reduction <add>, %66, %cst_37 [1, 2] : vector<1x8x1xf32> to vector<1xf32>
      %68 = vector.shape_cast %67 : vector<1xf32> to vector<1x1x1xf32>
      %69 = vector.extract %68[0, 0, 0] : f32 from vector<1x1x1xf32>
      %70 = vector.broadcast %69 : f32 to vector<1x8x128xf32>
      %71 = arith.addf %65, %70 : vector<1x8x128xf32>
      %c0_38 = arith.constant 0 : index
      %c0_39 = arith.constant 0 : index
      %c0_40 = arith.constant 0 : index
      %72 = vector.load %arg6[%c0_38, %c0_39, %c0_40] : memref<1x8x128xf32, #tpu.memory_space<vmem>>, vector<1x8x128xf32>
      tpu.vector_store %arg6[%c0_38, %c0_39, %c0_40], %71 {strides = array<i32>} : memref<1x8x128xf32, #tpu.memory_space<vmem>>, vector<1x8x128xf32>,
    } else {
    }
    return
  }
  func.func @transform_0(%arg0: i32, %arg1: i32) -> (i32, i32) {
    %c0_i32 = arith.constant 0 : i32
    %c0_i32_0 = arith.constant 0 : i32
    return %arg0, %c0_i32 : i32, i32
  }
  func.func @transform_1(%arg0: i32, %arg1: i32) -> (i32, i32) {
    %c0_i32 = arith.constant 0 : i32
    %c0_i32_0 = arith.constant 0 : i32
    return %c0_i32, %arg1 : i32, i32
  }
  func.func @transform_2(%arg0: i32, %arg1: i32) -> (i32, i32) {
    %c0_i32 = arith.constant 0 : i32
    %c0_i32_0 = arith.constant 0 : i32
    return %arg0, %c0_i32 : i32, i32
  }
  func.func @transform_3(%arg0: i32, %arg1: i32) -> (i32, i32, i32) {
    %c0_i32 = arith.constant 0 : i32
    %c0_i32_0 = arith.constant 0 : i32
    %c0_i32_1 = arith.constant 0 : i32
    return %arg0, %c0_i32, %c0_i32_0 : i32, i32, i32
  }
  func.func @transform_4(%arg0: i32, %arg1: i32) -> (i32, i32, i32) {
    %c0_i32 = arith.constant 0 : i32
    %c0_i32_0 = arith.constant 0 : i32
    %c0_i32_1 = arith.constant 0 : i32
    return %arg0, %c0_i32, %c0_i32_0 : i32, i32, i32
  }
}

</mosaic_0001>

<llo_original>
// kernel: tpu_custom_call.1
$region0: #{tpu_custom_call.1}
  #allocation0 [shape = 'u32[]', space=smem, size = 0x4, offset = 0x4, fixed_abs, tag = 'smem constant byte address 0x4 - core index']
  #allocation1 [shape = 'u32[144,128]{1,0:T(1,128)}', space=vmem, size = 0x12000, scoped, tag = 'internal scratch']
  %s0 = inlined_call_operand.hbm [shape: f32[8,128], index: 0, kind: input, shape index: {}]
  %s1 = inlined_call_operand.hbm [shape: f32[8,128], index: 1, kind: output, shape index: {}]
  %s2 = sld [smem:[#allocation0]]
  $region41: #{tpu_custom_call.1} parent=0
    _
  %s4 = ssub.s32 1, %s2
  %s5 = scalar_select 0, %s4, %s2
  $region1: #{tpu_custom_call.1} parent=0
    #allocation2 [shape = 'u8[4096]{0}', space=vmem, size = 0x1000, scoped, tag = 'input window, operand 0, single buffered']
    #allocation3 [shape = 's32[2]{0}', space=sflag, size = 0x8, scoped, tag = 'scoped memory for tpu_custom_call.1']
    #allocation4 [shape = 's32[2]{0}', space=sflag, size = 0x8, scoped, tag = 'scoped memory for tpu_custom_call.1']
    #allocation5 [shape = 'u8[4096]{0}', space=vmem, size = 0x1000, scoped, tag = 'output window, operand 0, single buffered']
    %6 = vsyncpa [#allocation3], 0
    %7 = vsyncpa [#allocation4], 0
    loop: start=0, step=1, limit=4
    $region2: #{tpu_custom_call.1} parent=1 // loop_pre_header
      _
    $region3: #{tpu_custom_call.1} parent=1 // loop_header
      %s9 = sphi 0, %s13
      %p10 = scmp.ge.s32.totalorder %s9, 4
      %s17 = sphi 0, %s17
      %s19 = sphi 0, %s17
      %s20 = sphi 0, %s19
      %s34 = sphi 0, %s20
      %s38 = sphi 0, %s38
      %s40 = sphi 0, %s38
      %s41 = sphi 0, %s40
      %s55 = sphi 0, %s41
    $region4: #{tpu_custom_call.1} parent=1 // loop_header_branch
      %12 = sbr.rel (%p10) target = $region8
    $region5: #{tpu_custom_call.1} parent=1 // loop_body
      %s14 = ssub.s32 %s9, 1
      %s15 = ssub.s32 %s9, 2
      %s16 = sadd.s32 %s9, 1
      %s18 = sadd.s32 %s17, 1
      %p21 = scmp.eq.s32.totalorder %s9, 1
      %p22 = scmp.ne.s32.totalorder %s17, %s19
      %p23 = scmp.eq.s32.totalorder %s9, 0
      %p24 = por %p22, %p23
      %p25 = scmp.ne.s32.totalorder %s17, %s19
      %p26 = scmp.eq.s32.totalorder %s14, 1
      %p27 = por %p25, %p26
      %p28 = scmp.ne.s32.totalorder %s19, %s20
      %p29 = scmp.eq.s32.totalorder %s14, 0
      %p30 = por %p28, %p29
      %p31 = scmp.ne.s32.totalorder %s19, %s20
      %p32 = scmp.eq.s32.totalorder %s15, 1
      %p33 = por %p31, %p32
      %p35 = scmp.ne.s32.totalorder %s20, %s34
      %p36 = scmp.eq.s32.totalorder %s15, 0
      %p37 = por %p35, %p36
      %s39 = sadd.s32 %s38, 1
      %p42 = scmp.eq.s32.totalorder %s9, 1
      %p43 = scmp.ne.s32.totalorder %s38, %s40
      %p44 = scmp.eq.s32.totalorder %s9, 0
      %p45 = por %p43, %p44
      %p46 = scmp.ne.s32.totalorder %s38, %s40
      %p47 = scmp.eq.s32.totalorder %s14, 1
      %p48 = por %p46, %p47
      %p49 = scmp.ne.s32.totalorder %s40, %s41
      %p50 = scmp.eq.s32.totalorder %s14, 0
      %p51 = por %p49, %p50
      %p52 = scmp.ne.s32.totalorder %s40, %s41
      %p53 = scmp.eq.s32.totalorder %s15, 1
      %p54 = por %p52, %p53
      %p56 = scmp.ne.s32.totalorder %s41, %s55
      %p57 = scmp.eq.s32.totalorder %s15, 0
      %p58 = por %p56, %p57
      %p59 = scmp.le.s32.totalorder 1, %s9
      %p60 = scmp.lt.s32.totalorder %s9, 3
      %p61 = pnand %p59, %p60
      %p62 = pneg %p61
      // Predicated region
      $region9: #{tpu_custom_call.1} parent=5 // pred_check
        _
      $region10: #{tpu_custom_call.1} parent=5 // pred_check_branch
        %64 = sbr.rel (%p61) target = $region12
      $region11: #{tpu_custom_call.1} parent=5 // pred_region
        %s65 = ssub.s32 %s9, 1
        // Predicated region
        $region13: #{tpu_custom_call.1} parent=11 // pred_check
          %p66 = pneg %p30
        $region14: #{tpu_custom_call.1} parent=11 // pred_check_branch
          %68 = sbr.rel (%p66) target = $region16
        $region15: #{tpu_custom_call.1} parent=11 // pred_region
          %s70 = ssub.s32 128, 128
          %71 = vsyncadd [#allocation3], %s70
          %s73 = sshll.u32 [#allocation2], 4
          %s74 = int_to_ptr.vmem [resolvable:$true] %s73
          %76 = dma.hbm_to_vmem [thread:$0]  %s0, 128, %s74, [#allocation3]
        $region16: #{tpu_custom_call.1} parent=11 // pred_fallthru
          _
      $region12: #{tpu_custom_call.1} parent=5 // pred_fallthru
        _
      %p77 = scmp.lt.s32.totalorder %s9, 2
      // Predicated region
      $region17: #{tpu_custom_call.1} parent=5 // pred_check
        %p78 = pneg %p77
      $region18: #{tpu_custom_call.1} parent=5 // pred_check_branch
        %80 = sbr.rel (%p78) target = $region20
      $region19: #{tpu_custom_call.1} parent=5 // pred_region
        _
      $region20: #{tpu_custom_call.1} parent=5 // pred_fallthru
        _
      %p81 = scmp.le.s32.totalorder 1, %s9
      %p82 = scmp.lt.s32.totalorder %s9, 3
      %p83 = pnand %p81, %p82
      %p84 = pneg %p83
      // Predicated region
      $region21: #{tpu_custom_call.1} parent=5 // pred_check
        _
      $region22: #{tpu_custom_call.1} parent=5 // pred_check_branch
        %86 = sbr.rel (%p83) target = $region24
      $region23: #{tpu_custom_call.1} parent=5 // pred_region
        %s87 = ssub.s32 %s9, 1
        // Predicated region
        $region25: #{tpu_custom_call.1} parent=23 // pred_check
          %p88 = pneg %p30
        $region26: #{tpu_custom_call.1} parent=23 // pred_check_branch
          %90 = sbr.rel (%p88) target = $region28
        $region27: #{tpu_custom_call.1} parent=23 // pred_region
          %91 = dma.done [#allocation3], 128
        $region28: #{tpu_custom_call.1} parent=23 // pred_fallthru
          _
        %p92 = pneg %p30
        %p93 = pneg %p27
        %p94 = pneg %p51
        %p95 = pneg %p48
        %v96 = vld [vmem:[#allocation2] sm:$0xff]
        %v97 = vadd.f32 %v96, 1.0
        %98 = vst [vmem:[#allocation5] sm:$0xff] %v97
        // Predicated region
        $region29: #{tpu_custom_call.1} parent=23 // pred_check
          %p99 = pneg %p48
        $region30: #{tpu_custom_call.1} parent=23 // pred_check_branch
          %101 = sbr.rel (%p99) target = $region32
        $region31: #{tpu_custom_call.1} parent=23 // pred_region
          %s103 = ssub.s32 128, 128
          %104 = vsyncadd [#allocation4], %s103
          %s106 = sshll.u32 [#allocation5], 4
          %s107 = int_to_ptr.vmem [resolvable:$true] %s106
          %109 = dma.vmem_to_hbm [thread:$0]  %s107, 128, %s1, [#allocation4]
        $region32: #{tpu_custom_call.1} parent=23 // pred_fallthru
          _
        // Predicated region
        $region33: #{tpu_custom_call.1} parent=23 // pred_check
          %p110 = pneg %p48
        $region34: #{tpu_custom_call.1} parent=23 // pred_check_branch
          %112 = sbr.rel (%p110) target = $region36
        $region35: #{tpu_custom_call.1} parent=23 // pred_region
          %113 = dma.done [#allocation4], 128
        $region36: #{tpu_custom_call.1} parent=23 // pred_fallthru
          _
      $region24: #{tpu_custom_call.1} parent=5 // pred_fallthru
        _
      %p114 = scmp.le.s32.totalorder 2, %s9
      // Predicated region
      $region37: #{tpu_custom_call.1} parent=5 // pred_check
        %p115 = pneg %p114
      $region38: #{tpu_custom_call.1} parent=5 // pred_check_branch
        %117 = sbr.rel (%p115) target = $region40
      $region39: #{tpu_custom_call.1} parent=5 // pred_region
        %s118 = ssub.s32 %s9, 2
      $region40: #{tpu_custom_call.1} parent=5 // pred_fallthru
        _
    $region6: #{tpu_custom_call.1} parent=1 // loop_footer
      %s13 = sadd.s32 1, %s9
    $region7: #{tpu_custom_call.1} parent=1 // loop_footer_branch
      %8 = sbr.rel target = $region3
    $region8: #{tpu_custom_call.1} parent=1 // loop_exit
      _
    %119 = vsyncpa [#allocation3], 1
    %s120 = scalar_lea.sflag [#allocation3], 1
    %121 = vsyncpa %s120, 1
    %122 = vsyncpa [#allocation4], 1
    %s123 = scalar_lea.sflag [#allocation4], 1
    %124 = vsyncpa %s123, 1

// kernel: model_with_loss_forward.1
$region0: #{model_with_loss_forward.1}
  #allocation0 [shape = 'u32[]', space=smem, size = 0x4, offset = 0x4, fixed_abs, tag = 'smem constant byte address 0x4 - core index']
  #allocation1 [shape = 'u32[144,128]{1,0:T(1,128)}', space=vmem, size = 0x12000, scoped, tag = 'internal scratch']
  #allocation2 [shape = 'f32[8,1]{1,0:T(8,128)}', space=vmem, size = 0x1000, scoped, tag = 'scratch operand']
  #allocation3 [shape = 'f32[8,1]{1,0:T(8,128)}', space=vmem, size = 0x1000, scoped, tag = 'scratch operand']
  #allocation4 [shape = 'f32[8,1]{1,0:T(8,128)}', space=vmem, size = 0x1000, scoped, tag = 'scratch operand']
  %s0 = inlined_call_operand.hbm [shape: bf16[16,32], index: 0, kind: input, shape index: {}]
  %s1 = inlined_call_operand.hbm [shape: bf16[32,384], index: 1, kind: input, shape index: {}]
  %s2 = inlined_call_operand.hbm [shape: s32[16,1], index: 2, kind: input, shape index: {}]
  %s3 = inlined_call_operand.hbm [shape: f32[2,8,128], index: 3, kind: output, shape index: {0}]
  %s4 = inlined_call_operand.hbm [shape: f32[2,8,128], index: 4, kind: output, shape index: {1}]
  %5 = xla_tuple %s3, %s4
  %s6 = sld [smem:[#allocation0]]
  $region73: #{model_with_loss_forward.1} parent=0
    _
  %s8 = ssub.s32 1, %s6
  %s9 = scalar_select 0, %s8, %s6
  $region1: #{model_with_loss_forward.1} parent=0
    #allocation5 [shape = 'u8[4096]{0}', space=vmem, size = 0x1000, scoped, tag = 'input window, operand 0']
    #allocation6 [shape = 's32[2]{0}', space=sflag, size = 0x8, scoped, tag = 'scoped memory for model_with_loss_forward.1']
    #allocation7 [shape = 's32[2]{0}', space=sflag, size = 0x8, scoped, tag = 'scoped memory for model_with_loss_forward.1']
    #allocation8 [shape = 'u8[16384]{0}', space=vmem, size = 0x4000, scoped, tag = 'input window, operand 1']
    #allocation9 [shape = 's32[2]{0}', space=sflag, size = 0x8, scoped, tag = 'scoped memory for model_with_loss_forward.1']
    #allocation10 [shape = 'u8[8192]{0}', space=vmem, size = 0x2000, scoped, tag = 'input window, operand 2']
    #allocation11 [shape = 'u8[8192]{0}', space=vmem, size = 0x2000, scoped, tag = 'output window, operand 0']
    #allocation12 [shape = 'u8[8192]{0}', space=vmem, size = 0x2000, scoped, tag = 'output window, operand 1']
    #allocation13 [shape = 's32[2]{0}', space=sflag, size = 0x8, scoped, tag = 'scoped memory for model_with_loss_forward.1']
    %10 = vsyncpa [#allocation6], 0
    %s11 = scalar_lea.sflag [#allocation6], 1
    %12 = vsyncpa %s11, 0
    %13 = vsyncpa [#allocation9], 0
    %s14 = scalar_lea.sflag [#allocation9], 1
    %15 = vsyncpa %s14, 0
    %16 = vsyncpa [#allocation7], 0
    %s17 = scalar_lea.sflag [#allocation7], 1
    %18 = vsyncpa %s17, 0
    %19 = vsyncpa [#allocation13], 0
    %s20 = scalar_lea.sflag [#allocation13], 1
    %21 = vsyncpa %s20, 0
    loop: start=0, step=1, limit=8
    $region2: #{model_with_loss_forward.1} parent=1 // loop_pre_header
      _
    $region3: #{model_with_loss_forward.1} parent=1 // loop_header
      %s23 = sphi 0, %s27
      %p24 = scmp.ge.s32.totalorder %s23, 8
      %s30 = sphi 0, %s42
      %s31 = sphi 0, %s38
      %s32 = sphi 0, %s30
      %s33 = sphi 0, %s31
      %s34 = sphi 0, %s32
      %s35 = sphi 0, %s33
      %s45 = sphi 0, %s47
      %s48 = sphi 0, %s45
      %s49 = sphi 0, %s48
      %s65 = sphi 0, %s49
      %s71 = sphi 0, %s73
      %s74 = sphi 0, %s71
      %s75 = sphi 0, %s74
      %s91 = sphi 0, %s75
      %s97 = sphi 0, %s99
      %s100 = sphi 0, %s97
      %s101 = sphi 0, %s100
      %s117 = sphi 0, %s101
      %s123 = sphi 0, %s125
      %s126 = sphi 0, %s123
      %s127 = sphi 0, %s126
      %s143 = sphi 0, %s127
      %s149 = sphi 0, %s151
      %s152 = sphi 0, %s149
      %s153 = sphi 0, %s152
      %s169 = sphi 0, %s153
    $region4: #{model_with_loss_forward.1} parent=1 // loop_header_branch
      %26 = sbr.rel (%p24) target = $region8
    $region5: #{model_with_loss_forward.1} parent=1 // loop_body
      %s28 = ssub.s32 %s23, 1
      %s29 = ssub.s32 %s23, 2
      %s36 = sadd.s32 1, %s31
      %p37 = scmp.ge.s32.totalorder %s36, 3
      %s38 = scalar_select %p37, 0, %s36
      %s39 = sadd.s32 1, %s30
      %s40 = scalar_select %p37, %s39, %s30
      %p41 = scmp.ge.s32.totalorder %s40, 2
      %s42 = scalar_select %p41, 0, %s40
      %s43 = ssub.s32 %s30, %s42
      %p44 = scmp.eq.s32.totalorder %s43, 0
      %s46 = sadd.s32 %s45, 1
      %s47 = scalar_select %p44, %s45, %s46
      %p50 = pneg %p44
      %p51 = scmp.eq.s32.totalorder %s23, 5
      %p52 = por %p50, %p51
      %p53 = scmp.ne.s32.totalorder %s45, %s48
      %p54 = scmp.eq.s32.totalorder %s23, 0
      %p55 = por %p53, %p54
      %p56 = scmp.ne.s32.totalorder %s45, %s48
      %p57 = scmp.eq.s32.totalorder %s28, 5
      %p58 = por %p56, %p57
      %p59 = scmp.ne.s32.totalorder %s48, %s49
      %p60 = scmp.eq.s32.totalorder %s28, 0
      %p61 = por %p59, %p60
      %p62 = scmp.ne.s32.totalorder %s48, %s49
      %p63 = scmp.eq.s32.totalorder %s29, 5
      %p64 = por %p62, %p63
      %p66 = scmp.ne.s32.totalorder %s49, %s65
      %p67 = scmp.eq.s32.totalorder %s29, 0
      %p68 = por %p66, %p67
      %s69 = ssub.s32 %s31, %s38
      %p70 = scmp.eq.s32.totalorder %s69, 0
      %s72 = sadd.s32 %s71, 1
      %s73 = scalar_select %p70, %s71, %s72
      %p76 = pneg %p70
      %p77 = scmp.eq.s32.totalorder %s23, 5
      %p78 = por %p76, %p77
      %p79 = scmp.ne.s32.totalorder %s71, %s74
      %p80 = scmp.eq.s32.totalorder %s23, 0
      %p81 = por %p79, %p80
      %p82 = scmp.ne.s32.totalorder %s71, %s74
      %p83 = scmp.eq.s32.totalorder %s28, 5
      %p84 = por %p82, %p83
      %p85 = scmp.ne.s32.totalorder %s74, %s75
      %p86 = scmp.eq.s32.totalorder %s28, 0
      %p87 = por %p85, %p86
      %p88 = scmp.ne.s32.totalorder %s74, %s75
      %p89 = scmp.eq.s32.totalorder %s29, 5
      %p90 = por %p88, %p89
      %p92 = scmp.ne.s32.totalorder %s75, %s91
      %p93 = scmp.eq.s32.totalorder %s29, 0
      %p94 = por %p92, %p93
      %s95 = ssub.s32 %s30, %s42
      %p96 = scmp.eq.s32.totalorder %s95, 0
      %s98 = sadd.s32 %s97, 1
      %s99 = scalar_select %p96, %s97, %s98
      %p102 = pneg %p96
      %p103 = scmp.eq.s32.totalorder %s23, 5
      %p104 = por %p102, %p103
      %p105 = scmp.ne.s32.totalorder %s97, %s100
      %p106 = scmp.eq.s32.totalorder %s23, 0
      %p107 = por %p105, %p106
      %p108 = scmp.ne.s32.totalorder %s97, %s100
      %p109 = scmp.eq.s32.totalorder %s28, 5
      %p110 = por %p108, %p109
      %p111 = scmp.ne.s32.totalorder %s100, %s101
      %p112 = scmp.eq.s32.totalorder %s28, 0
      %p113 = por %p111, %p112
      %p114 = scmp.ne.s32.totalorder %s100, %s101
      %p115 = scmp.eq.s32.totalorder %s29, 5
      %p116 = por %p114, %p115
      %p118 = scmp.ne.s32.totalorder %s101, %s117
      %p119 = scmp.eq.s32.totalorder %s29, 0
      %p120 = por %p118, %p119
      %s121 = ssub.s32 %s30, %s42
      %p122 = scmp.eq.s32.totalorder %s121, 0
      %s124 = sadd.s32 %s123, 1
      %s125 = scalar_select %p122, %s123, %s124
      %p128 = pneg %p122
      %p129 = scmp.eq.s32.totalorder %s23, 5
      %p130 = por %p128, %p129
      %p131 = scmp.ne.s32.totalorder %s123, %s126
      %p132 = scmp.eq.s32.totalorder %s23, 0
      %p133 = por %p131, %p132
      %p134 = scmp.ne.s32.totalorder %s123, %s126
      %p135 = scmp.eq.s32.totalorder %s28, 5
      %p136 = por %p134, %p135
      %p137 = scmp.ne.s32.totalorder %s126, %s127
      %p138 = scmp.eq.s32.totalorder %s28, 0
      %p139 = por %p137, %p138
      %p140 = scmp.ne.s32.totalorder %s126, %s127
      %p141 = scmp.eq.s32.totalorder %s29, 5
      %p142 = por %p140, %p141
      %p144 = scmp.ne.s32.totalorder %s127, %s143
      %p145 = scmp.eq.s32.totalorder %s29, 0
      %p146 = por %p144, %p145
      %s147 = ssub.s32 %s30, %s42
      %p148 = scmp.eq.s32.totalorder %s147, 0
      %s150 = sadd.s32 %s149, 1
      %s151 = scalar_select %p148, %s149, %s150
      %p154 = pneg %p148
      %p155 = scmp.eq.s32.totalorder %s23, 5
      %p156 = por %p154, %p155
      %p157 = scmp.ne.s32.totalorder %s149, %s152
      %p158 = scmp.eq.s32.totalorder %s23, 0
      %p159 = por %p157, %p158
      %p160 = scmp.ne.s32.totalorder %s149, %s152
      %p161 = scmp.eq.s32.totalorder %s28, 5
      %p162 = por %p160, %p161
      %p163 = scmp.ne.s32.totalorder %s152, %s153
      %p164 = scmp.eq.s32.totalorder %s28, 0
      %p165 = por %p163, %p164
      %p166 = scmp.ne.s32.totalorder %s152, %s153
      %p167 = scmp.eq.s32.totalorder %s29, 5
      %p168 = por %p166, %p167
      %p170 = scmp.ne.s32.totalorder %s153, %s169
      %p171 = scmp.eq.s32.totalorder %s29, 0
      %p172 = por %p170, %p171
      %p173 = scmp.le.s32.totalorder 1, %s23
      %p174 = scmp.lt.s32.totalorder %s23, 7
      %p175 = pnand %p173, %p174
      %p176 = pneg %p175
      // Predicated region
      $region9: #{model_with_loss_forward.1} parent=5 // pred_check
        _
      $region10: #{model_with_loss_forward.1} parent=5 // pred_check_branch
        %178 = sbr.rel (%p175) target = $region12
      $region11: #{model_with_loss_forward.1} parent=5 // pred_region
        %s179 = ssub.s32 %s23, 1
      $region12: #{model_with_loss_forward.1} parent=5 // pred_fallthru
        _
      %p180 = scmp.lt.s32.totalorder %s23, 6
      // Predicated region
      $region13: #{model_with_loss_forward.1} parent=5 // pred_check
        %p181 = pneg %p180
      $region14: #{model_with_loss_forward.1} parent=5 // pred_check_branch
        %183 = sbr.rel (%p181) target = $region16
      $region15: #{model_with_loss_forward.1} parent=5 // pred_region
        // Predicated region
        $region17: #{model_with_loss_forward.1} parent=15 // pred_check
          %p184 = pneg %p55
        $region18: #{model_with_loss_forward.1} parent=15 // pred_check_branch
          %186 = sbr.rel (%p184) target = $region20
        $region19: #{model_with_loss_forward.1} parent=15 // pred_region
          %s187 = sand.u32 %s45, 1
          %s188 = scalar_lea.sflag [#allocation6], %s187
          %s189 = sand.u32 %s45, 1
          %s190 = smul.addr %s189, 4
          %s191 = scalar_lea.vmem [#allocation5], %s190
          %s193 = ssub.s32 64, 64
          %194 = vsyncadd %s188, %s193
          %s195 = smul.addr %s30, 64
          %s196 = scalar_lea.hbm %s0, %s195
          %s198 = sshll.u32 %s191, 4
          %s199 = int_to_ptr.vmem [resolvable:$true] %s198
          %201 = dma.hbm_to_vmem [thread:$0]  %s196, 64, %s199, %s188
        $region20: #{model_with_loss_forward.1} parent=15 // pred_fallthru
          _
        // Predicated region
        $region21: #{model_with_loss_forward.1} parent=15 // pred_check
          %p202 = pneg %p81
        $region22: #{model_with_loss_forward.1} parent=15 // pred_check_branch
          %204 = sbr.rel (%p202) target = $region24
        $region23: #{model_with_loss_forward.1} parent=15 // pred_region
          %s205 = sand.u32 %s23, 1
          %s206 = scalar_lea.sflag [#allocation9], %s205
          %s207 = sand.u32 %s71, 1
          %s208 = smul.addr %s207, 16
          %s209 = scalar_lea.vmem [#allocation8], %s208
          %s211 = ssub.s32 256, 256
          %212 = vsyncadd %s206, %s211
          %s213 = smul.addr %s31, 64
          %s214 = scalar_lea.hbm %s1, %s213
          %s215 = sshll.u32 %s209, 4
          %s216 = int_to_ptr.vmem [resolvable:$true] %s215
          %221 = dma.hbm_to_vmem [thread:$0]  %s214, 256, %s216, %s206, 192, 64, 4
        $region24: #{model_with_loss_forward.1} parent=15 // pred_fallthru
          _
        // Predicated region
        $region25: #{model_with_loss_forward.1} parent=15 // pred_check
          %p222 = pneg %p107
        $region26: #{model_with_loss_forward.1} parent=15 // pred_check_branch
          %224 = sbr.rel (%p222) target = $region28
        $region27: #{model_with_loss_forward.1} parent=15 // pred_region
          %s225 = sand.u32 %s23, 1
          %s226 = scalar_lea.sflag [#allocation9], %s225
          %s227 = sand.u32 %s97, 1
          %s228 = smul.addr %s227, 8
          %s229 = scalar_lea.vmem [#allocation10], %s228
          %s231 = ssub.s32 128, 128
          %232 = vsyncadd %s226, %s231
          %s233 = smul.addr %s30, 128
          %s234 = scalar_lea.hbm %s2, %s233
          %s236 = sshll.u32 %s229, 4
          %s237 = int_to_ptr.vmem [resolvable:$true] %s236
          %239 = dma.hbm_to_vmem [thread:$0]  %s234, 128, %s237, %s226
        $region28: #{model_with_loss_forward.1} parent=15 // pred_fallthru
          _
      $region16: #{model_with_loss_forward.1} parent=5 // pred_fallthru
        _
      %p240 = scmp.le.s32.totalorder 1, %s23
      %p241 = scmp.lt.s32.totalorder %s23, 7
      %p242 = pnand %p240, %p241
      %p243 = pneg %p242
      // Predicated region
      $region29: #{model_with_loss_forward.1} parent=5 // pred_check
        _
      $region30: #{model_with_loss_forward.1} parent=5 // pred_check_branch
        %245 = sbr.rel (%p242) target = $region32
      $region31: #{model_with_loss_forward.1} parent=5 // pred_region
        %s246 = ssub.s32 %s23, 1
        %s247 = sand.u32 %s48, 1
        %s248 = scalar_lea.sflag [#allocation6], %s247
        %s249 = sand.u32 %s48, 1
        %s250 = smul.addr %s249, 4
        %s251 = scalar_lea.vmem [#allocation5], %s250
        // Predicated region
        $region33: #{model_with_loss_forward.1} parent=31 // pred_check
          %p252 = pneg %p61
        $region34: #{model_with_loss_forward.1} parent=31 // pred_check_branch
          %254 = sbr.rel (%p252) target = $region36
        $region35: #{model_with_loss_forward.1} parent=31 // pred_region
          %255 = dma.done %s248, 64
        $region36: #{model_with_loss_forward.1} parent=31 // pred_fallthru
          _
        %s256 = sand.u32 %s28, 1
        %s257 = scalar_lea.sflag [#allocation9], %s256
        %s258 = sand.u32 %s74, 1
        %s259 = smul.addr %s258, 16
        %s260 = scalar_lea.vmem [#allocation8], %s259
        // Predicated region
        $region37: #{model_with_loss_forward.1} parent=31 // pred_check
          %p261 = pneg %p87
        $region38: #{model_with_loss_forward.1} parent=31 // pred_check_branch
          %263 = sbr.rel (%p261) target = $region40
        $region39: #{model_with_loss_forward.1} parent=31 // pred_region
          %264 = dma.done %s257, 256
        $region40: #{model_with_loss_forward.1} parent=31 // pred_fallthru
          _
        %s265 = sand.u32 %s28, 1
        %s266 = scalar_lea.sflag [#allocation9], %s265
        %s267 = sand.u32 %s100, 1
        %s268 = smul.addr %s267, 8
        %s269 = scalar_lea.vmem [#allocation10], %s268
        // Predicated region
        $region41: #{model_with_loss_forward.1} parent=31 // pred_check
          %p270 = pneg %p113
        $region42: #{model_with_loss_forward.1} parent=31 // pred_check_branch
          %272 = sbr.rel (%p270) target = $region44
        $region43: #{model_with_loss_forward.1} parent=31 // pred_region
          %273 = dma.done %s266, 128
        $region44: #{model_with_loss_forward.1} parent=31 // pred_fallthru
          _
        %s274 = sand.u32 %s48, 1
        %s275 = scalar_lea.sflag [#allocation6], %s274
        %s276 = sand.u32 %s48, 1
        %s277 = smul.addr %s276, 4
        %s278 = scalar_lea.vmem [#allocation5], %s277
        %p279 = pneg %p61
        %p280 = pneg %p58
        %s281 = sand.u32 %s28, 1
        %s282 = scalar_lea.sflag [#allocation9], %s281
        %s283 = sand.u32 %s74, 1
        %s284 = smul.addr %s283, 16
        %s285 = scalar_lea.vmem [#allocation8], %s284
        %p286 = pneg %p87
        %p287 = pneg %p84
        %s288 = sand.u32 %s28, 1
        %s289 = scalar_lea.sflag [#allocation9], %s288
        %s290 = sand.u32 %s100, 1
        %s291 = smul.addr %s290, 8
        %s292 = scalar_lea.vmem [#allocation10], %s291
        %p293 = pneg %p113
        %p294 = pneg %p110
        %p295 = pneg %p139
        %p296 = pneg %p136
        %s297 = sand.u32 %s126, 1
        %s298 = scalar_lea.sflag [#allocation7], %s297
        %s299 = sand.u32 %s126, 1
        %s300 = smul.addr %s299, 8
        %s301 = scalar_lea.vmem [#allocation11], %s300
        %p302 = pneg %p165
        %p303 = pneg %p162
        %s304 = sand.u32 %s152, 1
        %s305 = scalar_lea.sflag [#allocation13], %s304
        %s306 = sand.u32 %s152, 1
        %s307 = smul.addr %s306, 8
        %s308 = scalar_lea.vmem [#allocation12], %s307
        %p310 = scmp.eq.s32.totalorder %s33, 0
        // Predicated region
        $region45: #{model_with_loss_forward.1} parent=31 // pred_check
          %p311 = pneg %p310
        $region46: #{model_with_loss_forward.1} parent=31 // pred_check_branch
          %313 = sbr.rel (%p311) target = $region48
        $region47: #{model_with_loss_forward.1} parent=31 // pred_region
          %vm314 = vcmask 7168
          %315 = vst.msk [vmem:[#allocation2] sm:$0xff] %vm314, -inf
          %316 = vst.msk [vmem:[#allocation3] sm:$0xff] %vm314, 0.0
          %317 = vst.msk [vmem:[#allocation4] sm:$0xff] %vm314, 0.0
        $region48: #{model_with_loss_forward.1} parent=31 // pred_fallthru
          _
        %v318 = vld [vmem:[%s251] sm:$0xf]
        %v319 = vld [vmem:[%s260] sm:$0xf]
        %v320 = vld [vmem:[%s260 + $0x4] sm:$0xf]
        %v321 = vld [vmem:[%s260 + $0x8] sm:$0xf]
        %v322 = vld [vmem:[%s260 + $0xc] sm:$0xf]
        %v327 = vunpack.c.l.b16 %v319
        %v328 = vunpack.c.l.b16 %v320
        %v329 = vunpack.c.l.b16 %v321
        %v330 = vunpack.c.l.b16 %v322
        %v331 = vpack.c.b16 %v328, %v327
        %v332 = vpack.c.b16 %v330, %v329
        %vm335 = vcmask 261120
        %v337 = vsel %vm335, %v318, 0
        %339 = vmatprep.subr.bf16.mxu0 0
        %340 = vmatpush1.bf16.msra.mxu0 %v331
        %341 = vmatprep.subr.bf16.mxu0 0
        %342 = vmatpush1.bf16.msra.mxu0 %v332
        %343 = vmatprep.subr.bf16.mxu0 0
        %344 = vmatpush1.bf16.msra.mxu0 0
        %345 = vmatprep.subr.bf16.mxu0 0
        %346 = vmatpush1.bf16.msra.mxu0 0
        %347 = vmatprep.subr.bf16.mxu0 0
        %348 = vmatpush1.bf16.msra.mxu0 0
        %349 = vmatprep.subr.bf16.mxu0 0
        %350 = vmatpush1.bf16.msra.mxu0 0
        %351 = vmatprep.subr.bf16.mxu0 0
        %352 = vmatpush1.bf16.msra.mxu0 0
        %353 = vmatprep.subr.bf16.mxu0 0
        %354 = vmatpush1.bf16.msra.mxu0 0
        %355 = vmatprep.subr.bf16.mxu0 0
        %356 = vmatpush1.bf16.msra.mxu0 0
        %357 = vmatprep.subr.bf16.mxu0 0
        %358 = vmatpush1.bf16.msra.mxu0 0
        %359 = vmatprep.subr.bf16.mxu0 0
        %360 = vmatpush1.bf16.msra.mxu0 0
        %361 = vmatprep.subr.bf16.mxu0 0
        %362 = vmatpush1.bf16.msra.mxu0 0
        %363 = vmatprep.subr.bf16.mxu0 0
        %364 = vmatpush1.bf16.msra.mxu0 0
        %365 = vmatprep.subr.bf16.mxu0 0
        %366 = vmatpush1.bf16.msra.mxu0 0
        %367 = vmatprep.subr.bf16.mxu0 0
        %368 = vmatpush1.bf16.msra.mxu0 0
        %369 = vmatprep.subr.bf16.mxu0 0
        %370 = vmatpush1.bf16.msra.mxu0 0
        %371 = vmatprep.mubr.bf16.mxu0 0
        %372 = vmatmul.mubr.bf16.gmra.mrb[0].mxu0 %v337
        %v373 = vpop.f32.mrb[0].mxu0
        %v374 = vadd.f32 0.0, %v373
        %v375 = vpop.f32.mrb[0].mxu0
        %v376 = vpop.f32.mrb[0].mxu0
        %v377 = vpop.f32.mrb[0].mxu0
        %378 = vdwg.mxu0
        %s379 = smul.u32 %s33, 128
        %v380 = vlaneseq
        %v381 = vand.u32 %v380, 127
        %v382 = vstv %s379
        %v383 = vadd.s32 %v382, %v381
        %vm384 = vcmp.lt.s32.totalorder %v383, 300
        %v385 = vsel %vm384, 1, 0
        %vm386 = vcmp.eq.s32.totalorder %v385, 1
        %v387 = vsel %vm386, %v374, -inf
        %v388 = vld [vmem:[%s269] sm:$0xff]
        %v389 = vld [vmem:[#allocation4] sm:$0xff]
        %390 = vset.pattern.permute.xlu0 0
        %391 = vperm.xlu0 %390, %v388
        %v392 = vpop.permute.xlu0 %391
        %vm393 = vcmp.eq.s32.totalorder %v383, %v392
        %v394 = vsel %vm393, %v387, 0.0
        %395 = vadd.xlane.f32.xlu0 %v394
        %v396 = vpop.xlane.xlu0 %395
        %v397 = vadd.f32 %v389, %v396
        %vm398 = vcmask 7168
        %399 = vst.msk [vmem:[#allocation4] sm:$0xff] %vm398, %v397
        %v400 = vld [vmem:[#allocation2] sm:$0xff]
        %401 = vmax.xlane.f32.xlu0 %v387
        %v402 = vpop.xlane.xlu0 %401
        %v403 = vmax.f32 %v400, %v402
        %v404 = vld [vmem:[#allocation3] sm:$0xff]
        %v405 = vsub.f32 %v400, %v403
        %v406 = vmul.f32 %v405, 1.442695
        %v407 = vpow.pop %v406
        %v408 = vmul.f32 %v404, %v407
        %410 = vset.pattern.permute.xlu0 0
        %411 = vperm.xlu0 %410, %v403
        %v412 = vpop.permute.xlu0 %411
        %v414 = vsub.f32 %v387, %v412
        %v415 = vmul.f32 %v414, 1.442695
        %v416 = vpow.pop %v415
        %417 = vadd.xlane.f32.xlu0 %v416
        %v418 = vpop.xlane.xlu0 %417
        %v419 = vadd.f32 %v408, %v418
        %420 = vst.msk [vmem:[#allocation3] sm:$0xff] %vm398, %v419
        %421 = vst.msk [vmem:[#allocation2] sm:$0xff] %vm398, %v403
        %p422 = scmp.eq.s32.totalorder %s33, 2
        // Predicated region
        $region49: #{model_with_loss_forward.1} parent=31 // pred_check
          %p423 = pneg %p422
        $region50: #{model_with_loss_forward.1} parent=31 // pred_check_branch
          %425 = sbr.rel (%p423) target = $region52
        $region51: #{model_with_loss_forward.1} parent=31 // pred_region
          %v426 = vld [vmem:[#allocation2] sm:$0xff]
          %v427 = vld [vmem:[#allocation3] sm:$0xff]
          %v428 = vlog2.pop %v427
          %v429 = vmul.f32 %v428, 0.6931472
          %v430 = vadd.f32 %v426, %v429
          %vm431 = vcmp.ne.s32.totalorder %v388, 0
          %v432 = vsel %vm431, 1, 0
          %v433 = vcvt.s32.f32 %v432
          %v434 = vld [vmem:[#allocation4] sm:$0xff]
          %v435 = vsub.f32 %v430, %v434
          %v436 = vmul.f32 %v435, %v433
          %v437 = vsel %vm398, %v436, 0.0
          %438 = vadd.xlane.f32.xlu0 %v437
          %v439 = vpop.xlane.xlu0 %438
          %v440 = vrot.slane %v439, 4
          %v441 = vadd.f32 %v439, %v440
          %v442 = vrot.slane %v441, 2
          %v443 = vadd.f32 %v441, %v442
          %v444 = vrot.slane %v443, 1
          %v445 = vadd.f32 %v443, %v444
          %s446 = vtos %v445
          %v447 = vstv %s446
          %v448 = vadd.f32 %v447, 0.0
          %449 = vst [vmem:[%s301] sm:$0xff] %v448
          %v450 = vsel %vm398, %v433, 0.0
          %451 = vadd.xlane.f32.xlu0 %v450
          %v452 = vpop.xlane.xlu0 %451
          %v453 = vrot.slane %v452, 4
          %v454 = vadd.f32 %v452, %v453
          %v455 = vrot.slane %v454, 2
          %v456 = vadd.f32 %v454, %v455
          %v457 = vrot.slane %v456, 1
          %v458 = vadd.f32 %v456, %v457
          %s459 = vtos %v458
          %v460 = vstv %s459
          %v461 = vadd.f32 %v460, 0.0
          %462 = vst [vmem:[%s308] sm:$0xff] %v461
        $region52: #{model_with_loss_forward.1} parent=31 // pred_fallthru
          _
        %s463 = sand.u32 %s126, 1
        %s464 = scalar_lea.sflag [#allocation7], %s463
        %s465 = sand.u32 %s126, 1
        %s466 = smul.addr %s465, 8
        %s467 = scalar_lea.vmem [#allocation11], %s466
        %s468 = sand.u32 %s152, 1
        %s469 = scalar_lea.sflag [#allocation13], %s468
        %s470 = sand.u32 %s152, 1
        %s471 = smul.addr %s470, 8
        %s472 = scalar_lea.vmem [#allocation12], %s471
        // Predicated region
        $region53: #{model_with_loss_forward.1} parent=31 // pred_check
          %p473 = pneg %p136
        $region54: #{model_with_loss_forward.1} parent=31 // pred_check_branch
          %475 = sbr.rel (%p473) target = $region56
        $region55: #{model_with_loss_forward.1} parent=31 // pred_region
          %s477 = ssub.s32 128, 128
          %478 = vsyncadd %s464, %s477
          %s479 = smul.addr %s32, 128
          %s480 = scalar_lea.hbm %s3, %s479
          %s482 = sshll.u32 %s467, 4
          %s483 = int_to_ptr.vmem [resolvable:$true] %s482
          %485 = dma.vmem_to_hbm [thread:$0]  %s483, 128, %s480, %s464
        $region56: #{model_with_loss_forward.1} parent=31 // pred_fallthru
          _
        // Predicated region
        $region57: #{model_with_loss_forward.1} parent=31 // pred_check
          %p486 = pneg %p162
        $region58: #{model_with_loss_forward.1} parent=31 // pred_check_branch
          %488 = sbr.rel (%p486) target = $region60
        $region59: #{model_with_loss_forward.1} parent=31 // pred_region
          %s490 = ssub.s32 128, 128
          %491 = vsyncadd %s469, %s490
          %s492 = smul.addr %s32, 128
          %s493 = scalar_lea.hbm %s4, %s492
          %s495 = sshll.u32 %s472, 4
          %s496 = int_to_ptr.vmem [resolvable:$true] %s495
          %498 = dma.vmem_to_hbm [thread:$0]  %s496, 128, %s493, %s469
        $region60: #{model_with_loss_forward.1} parent=31 // pred_fallthru
          _
      $region32: #{model_with_loss_forward.1} parent=5 // pred_fallthru
        _
      %p499 = scmp.le.s32.totalorder 2, %s23
      // Predicated region
      $region61: #{model_with_loss_forward.1} parent=5 // pred_check
        %p500 = pneg %p499
      $region62: #{model_with_loss_forward.1} parent=5 // pred_check_branch
        %502 = sbr.rel (%p500) target = $region64
      $region63: #{model_with_loss_forward.1} parent=5 // pred_region
        %s503 = ssub.s32 %s23, 2
        // Predicated region
        $region65: #{model_with_loss_forward.1} parent=63 // pred_check
          %p504 = pneg %p142
        $region66: #{model_with_loss_forward.1} parent=63 // pred_check_branch
          %506 = sbr.rel (%p504) target = $region68
        $region67: #{model_with_loss_forward.1} parent=63 // pred_region
          %s507 = sand.u32 %s127, 1
          %s508 = scalar_lea.sflag [#allocation7], %s507
          %s509 = sand.u32 %s127, 1
          %s510 = smul.addr %s509, 8
          %s511 = scalar_lea.vmem [#allocation11], %s510
          %512 = dma.done %s508, 128
        $region68: #{model_with_loss_forward.1} parent=63 // pred_fallthru
          _
        // Predicated region
        $region69: #{model_with_loss_forward.1} parent=63 // pred_check
          %p513 = pneg %p168
        $region70: #{model_with_loss_forward.1} parent=63 // pred_check_branch
          %515 = sbr.rel (%p513) target = $region72
        $region71: #{model_with_loss_forward.1} parent=63 // pred_region
          %s516 = sand.u32 %s153, 1
          %s517 = scalar_lea.sflag [#allocation13], %s516
          %s518 = sand.u32 %s153, 1
          %s519 = smul.addr %s518, 8
          %s520 = scalar_lea.vmem [#allocation12], %s519
          %521 = dma.done %s517, 128
        $region72: #{model_with_loss_forward.1} parent=63 // pred_fallthru
          _
      $region64: #{model_with_loss_forward.1} parent=5 // pred_fallthru
        _
    $region6: #{model_with_loss_forward.1} parent=1 // loop_footer
      %s27 = sadd.s32 1, %s23
    $region7: #{model_with_loss_forward.1} parent=1 // loop_footer_branch
      %22 = sbr.rel target = $region3
    $region8: #{model_with_loss_forward.1} parent=1 // loop_exit
      _
    %522 = vsyncpa [#allocation6], 1
    %s523 = scalar_lea.sflag [#allocation6], 1
    %524 = vsyncpa %s523, 1
    %525 = vsyncpa [#allocation9], 1
    %s526 = scalar_lea.sflag [#allocation9], 1
    %527 = vsyncpa %s526, 1
    %528 = vsyncpa [#allocation7], 1
    %s529 = scalar_lea.sflag [#allocation7], 1
    %530 = vsyncpa %s529, 1
    %531 = vsyncpa [#allocation13], 1
    %s532 = scalar_lea.sflag [#allocation13], 1
    %533 = vsyncpa %s532, 1

</llo_original>
